<compile_context>
chip_gen: v7x
topology: tpu7x:2x2x1
jax: 0.10.0
libtpu: 0.0.40
codegen_flags: <defaults>
</compile_context>

<pallas_src>
import numpy as np
import jax
import jax.numpy as jnp
from jax import lax
from jax.experimental import pallas as pl
from jax.experimental.pallas import tpu as pltpu

LANE = 128
_CHUNK_ROWS = 512        # strip-mine granularity inside a tile (256 KiB f32 temps)
_MAX_TILE_ROWS = 4096    # ~2 MiB / input / buffer at f32; past this step overhead is amortized
_ROW_MULT = {4: 8, 2: 16, 1: 32}   # min second-minor block multiple per itemsize


def _round_up(a, b):
    return -(-a // b) * b


def _as_rows(x):
    """Free reshape to a lane-major (R, 128) slab.

    Only element counts that are not a multiple of 128 take a (tiny, <=127
    element) tail pad; since the same pad is applied to predictions and target,
    padded positions contribute 0 squared error and the mean uses the true N.
    """
    flat = x.reshape(-1)
    rem = flat.shape[0] % LANE
    if rem:
        # TODO(synk): sub-128 ragged tails still force a padded copy; handle the
        # last <128 elements with a separate scalar pass if such shapes matter.
        flat = jnp.pad(flat, (0, LANE - rem))
    return flat.reshape(-1, LANE)


def _tpu_vmem_capacity_bytes():
    try:
        cap = int(getattr(pltpu.get_tpu_info(), "vmem_capacity_bytes", 0))
        if cap > 0:
            return cap
    except Exception:
        pass
    return 64 << 20   # conservative (v7x-sized) fallback


def _num_tensorcores():
    """2 on megacore chips (v4 / v5p / v7x), else 1.  Safe to under-report."""
    try:
        kind = jax.devices()[0].device_kind.lower()
    except Exception:
        return 1
    if any(tag in kind for tag in ("v4", "v5p", "v7")):
        return 2
    return 1


def _pick_tiling(n_rows, num_inputs, itemsize, row_mult):
    """Tile rows / chunk rows / vmem limit from a per-generation VMEM budget."""
    cap = _tpu_vmem_capacity_bytes()
    # Budget for the (K+1) double-buffered streaming inputs; the rest of the
    # scoped window is left for accumulators, chunk temporaries and scratch.
    budget = min(cap // 2 - (4 << 20), 28 << 20)
    per_row = (num_inputs + 1) * 2 * LANE * itemsize
    tr = max(budget // per_row, 2 * row_mult)
    tr = min(tr, _MAX_TILE_ROWS)
    if tr >= _CHUNK_ROWS:
        tr = (tr // _CHUNK_ROWS) * _CHUNK_ROWS
    else:
        tr = (tr // row_mult) * row_mult
    # No point tiling bigger than the data itself.
    r_cap = _round_up(n_rows, row_mult)
    if tr > r_cap:
        tr = _round_up(r_cap, _CHUNK_ROWS) if r_cap >= _CHUNK_ROWS else r_cap
    ch = _CHUNK_ROWS if tr % _CHUNK_ROWS == 0 else tr
    in_buffer_bytes = (num_inputs + 1) * 2 * tr * LANE * itemsize
    vmem_limit = int(min(max(in_buffer_bytes + (16 << 20), 32 << 20),
                         cap - (4 << 20)))
    return tr, ch, vmem_limit


def _make_kernel(num_inputs, coefs, tile_rows, chunk_rows, valid_rows,
                 needs_mask, blocks_per_core):
    """Fused multi-input MSE kernel.

    Refs (in order):
      pred_refs[0..K-1] : (TR, 128) prediction tiles (native dtype)
      tgt_ref           : (TR, 128) shared target tile
      out_ref           : (1, K+1, 8, 128) per-core resident output block
                          [0] = combined loss partial, [k+1] = weighted loss_k
      acc_ref           : (K, 1, 128) f32 lane-partial SSE accumulator

    coefs[k] = w_k / (sum(w) * N_true) are static Python floats.
    """
    K = num_inputs
    n_chunks = tile_rows // chunk_rows
    first_full_end = valid_rows // tile_rows   # blocks below this are fully valid

    def kernel(*refs):
        pred_refs = refs[:K]
        tgt_ref = refs[K]
        out_ref = refs[K + 1]
        acc_ref = refs[K + 2]

        c = pl.program_id(0)                   # TensorCore ("parallel") axis
        r = pl.program_id(1)                   # streaming / reduction axis
        b_raw = c * blocks_per_core + r        # logical row-block index

        @pl.when(r == 0)
        def _():
            acc_ref[...] = jnp.zeros_like(acc_ref)

        def accumulate(masked):
            if masked:
                row_iota = lax.broadcasted_iota(jnp.int32, (chunk_rows, LANE), 0)
                tile_base = b_raw * tile_rows

            def chunk_body(ci, carry):
                start = pl.multiple_of(ci * chunk_rows, chunk_rows)
                tgt = tgt_ref[pl.ds(start, chunk_rows), :].astype(jnp.float32)
                if masked:
                    valid = (tile_base + start + row_iota) < valid_rows
                for k in range(K):
                    pred = pred_refs[k][pl.ds(start, chunk_rows), :]
                    diff = pred.astype(jnp.float32) - tgt
                    dsq = diff * diff
                    if masked:
                        dsq = jnp.where(valid, dsq, 0.0)
                    # (CH,128) -> (1,128): VALU tree-adds + one sublane reduce.
                    acc_ref[k] += jnp.sum(dsq, axis=0, keepdims=True)
                return carry

            lax.fori_loop(0, n_chunks, chunk_body, 0, unroll=True)

        if needs_mask:
            @pl.when(b_raw < first_full_end)
            def _():
                accumulate(masked=False)

            @pl.when(b_raw >= first_full_end)
            def _():
                accumulate(masked=True)
        else:
            accumulate(masked=False)

        @pl.when(r == pl.num_programs(1) - 1)
        def _():
            combined = jnp.zeros((8, LANE), jnp.float32)
            for k in range(K):
                # SSE_k * w_k / (sum_w * N)  ==  w_k * mse_k / sum_w
                wl = jnp.full((8, LANE), jnp.sum(acc_ref[k]) * coefs[k],
                              dtype=jnp.float32)
                out_ref[0, k + 1] = wl
                combined = combined + wl
            out_ref[0, 0] = combined

    return kernel


def multi_input_loss(inputs_list, target, weight):
    """JAX/Pallas equivalent of MultiInputLoss.forward with func = MSE loss.

    inputs_list: tuple of predictions, each shaped like `target` (or one array)
    target     : target array
    weight     : sequence of python floats (zip() truncation semantics)
    Returns dict: {'loss', 'loss_0', ..., 'loss_{K-1}'}
    """
    if not isinstance(inputs_list, tuple):
        inputs_list = (inputs_list,)
    K = min(len(inputs_list), len(weight))      # zip() semantics of the reference
    inputs_list = inputs_list[:K]
    for x in inputs_list:
        assert x.shape == target.shape, "predictions must match the target shape"

    n_true = int(np.prod(target.shape))
    w = [float(v) for v in weight[:K]]
    sum_w = float(sum(w))
    coefs = tuple(wi / (sum_w * n_true) for wi in w)    # static, baked into kernel

    preds2d = [_as_rows(x) for x in inputs_list]
    target2d = _as_rows(target)
    n_rows = target2d.shape[0]

    arrays = (*preds2d, target2d)
    itemsize = max(a.dtype.itemsize for a in arrays)
    row_mult = max(_ROW_MULT.get(a.dtype.itemsize, 8) for a in arrays)
    tr, ch, vmem_limit = _pick_tiling(n_rows, K, itemsize, row_mult)

    blocks_total = pl.cdiv(n_rows, tr)
    n_cores = min(_num_tensorcores(), blocks_total)
    bpc = pl.cdiv(blocks_total, n_cores)
    needs_mask = (blocks_total * tr != n_rows) or (n_cores * bpc != blocks_total)

    kernel = _make_kernel(K, coefs, tr, ch, n_rows, needs_mask, bpc)

    def in_map(c, r):
        # Clamp so out-of-range logical blocks (only possible on the last core
        # when blocks don't split evenly) re-read an in-bounds block; the
        # kernel's row mask zeroes their contribution.
        return (jnp.minimum(c * bpc + r, blocks_total - 1), 0)

    out = pl.pallas_call(
        kernel,
        out_shape=jax.ShapeDtypeStruct((n_cores, K + 1, 8, LANE), jnp.float32),
        grid_spec=pltpu.PrefetchScalarGridSpec(
            num_scalar_prefetch=0,
            grid=(n_cores, bpc),
            in_specs=[pl.BlockSpec((tr, LANE), in_map) for _ in range(K + 1)],
            out_specs=pl.BlockSpec((1, K + 1, 8, LANE),
                                   lambda c, r: (c, 0, 0, 0)),
            scratch_shapes=[pltpu.VMEM((K, 1, LANE), jnp.float32)],
        ),
        compiler_params=pltpu.CompilerParams(
            dimension_semantics=("parallel", "arbitrary"),
            vmem_limit_bytes=vmem_limit,
        ),
    )(*preds2d, target2d)

    vals = out.sum(axis=0)[:, 0, 0]   # tiny per-core reduction: (K+1,) values
    losses = {"loss": vals[0]}
    for i in range(K):
        losses[f"loss_{i}"] = vals[i + 1]
    return losses


def _reference(inputs_list, target, weight):
    """Plain-JAX reference mirroring the PyTorch module with func = MSE."""
    if not isinstance(inputs_list, tuple):
        inputs_list = (inputs_list,)
    losses = {}
    combined = 0.0
    sum_w = 0.0
    tgt = target.astype(jnp.float32)
    for idx, (wi, x) in enumerate(zip(weight, inputs_list)):
        mse = jnp.mean((x.astype(jnp.float32) - tgt) ** 2)
        combined = combined + wi * mse
        losses[f"loss_{idx}"] = wi * mse
        sum_w += wi
    losses["loss"] = combined
    return {k: v / sum_w for k, v in losses.items()}


if __name__ == "__main__":
    root = jax.random.PRNGKey(0)

    def run_case(name, shape, dtype, n_preds, weight, key):
        keys = jax.random.split(key, n_preds + 1)
        preds = tuple(
            jax.random.normal(k, shape, dtype=jnp.float32).astype(dtype)
            for k in keys[:-1])
        target = jax.random.normal(keys[-1], shape, dtype=jnp.float32).astype(dtype)
        got = multi_input_loss(preds, target, weight)
        got = jax.tree_util.tree_map(jax.block_until_ready, got)
        ref = _reference(preds, target, weight)
        for k in ref:
            assert jnp.allclose(got[k], ref[k], rtol=1e-4, atol=1e-6), (
                name, k, got[k], ref[k])

    k1, k2, k3 = jax.random.split(root, 3)
    # Small multi-scale style case, (8,128)-aligned element count.
    run_case("aligned_f32", (2, 4, 16, 16), jnp.float32, 3, [1.0, 0.5, 0.25], k1)
    # Ragged element count: exercises the in-kernel row mask path.
    run_case("ragged_f32", (2, 3, 17, 16), jnp.float32, 2, [1.0, 0.5], k2)
    # bf16 predictions/target streamed natively (half the HBM bytes).
    run_case("bf16", (2, 4, 16, 16), jnp.bfloat16, 3, [1.0, 0.5, 0.25], k3)

    print("KERNEL_OK")
</pallas_src>

<mosaic_0001>
module attributes {stable_mosaic.version = 11 : i64} {
  func.func @kernel(%arg0: i32, %arg1: i32, %arg2: memref<16x128xf32, #tpu.memory_space<vmem>>, %arg3: memref<16x128xf32, #tpu.memory_space<vmem>>, %arg4: memref<16x128xf32, #tpu.memory_space<vmem>>, %arg5: memref<16x128xf32, #tpu.memory_space<vmem>>, %arg6: memref<1x4x8x128xf32, #tpu.memory_space<vmem>>, %arg7: memref<3x1x128xf32, #tpu.memory_space<vmem>>) attributes {dimension_semantics = [#tpu.dimension_semantics<parallel>, #tpu.dimension_semantics<arbitrary>], iteration_bounds = array<i64: 1, 1>, scalar_prefetch = 0 : i64, scratch_operands = 1 : i64, tpu.core_type = #tpu.core_type<tc>, window_params = [{transform_indices = @transform_0, window_bounds = array<i64: 16, 128>}, {transform_indices = @transform_1, window_bounds = array<i64: 16, 128>}, {transform_indices = @transform_2, window_bounds = array<i64: 16, 128>}, {transform_indices = @transform_3, window_bounds = array<i64: 16, 128>}, {transform_indices = @transform_4, window_bounds = array<i64: 1, 4, 8, 128>}]} {
    %c0_i32 = arith.constant 0 : i32
    %0 = arith.cmpi eq, %arg1, %c0_i32 : i32
    %1 = arith.extui %0 : i1 to i32
    %c0_i32_0 = arith.constant 0 : i32
    %2 = arith.cmpi ne, %1, %c0_i32_0 : i32
    scf.if %2 {
      %cst_25 = arith.constant 0.000000e+00 : f32
      %46 = vector.broadcast %cst_25 : f32 to vector<3x1x128xf32>
      %c0_26 = arith.constant 0 : index
      %c0_27 = arith.constant 0 : index
      %c0_28 = arith.constant 0 : index
      %47 = vector.load %arg7[%c0_26, %c0_27, %c0_28] : memref<3x1x128xf32, #tpu.memory_space<vmem>>, vector<3x1x128xf32>
      tpu.vector_store %arg7[%c0_26, %c0_27, %c0_28], %46 {strides = array<i32>} : memref<3x1x128xf32, #tpu.memory_space<vmem>>, vector<3x1x128xf32>,
    } else {
    }
    %c0_i32_1 = arith.constant 0 : i32
    %c16_i32 = arith.constant 16 : i32
    %3 = arith.muli %c0_i32_1, %c16_i32 : i32
    %4 = tpu.assume_multiple %3, 16 : i32
    %5 = arith.index_cast %4 : i32 to index
    %c0 = arith.constant 0 : index
    %6 = vector.load %arg5[%5, %c0] : memref<16x128xf32, #tpu.memory_space<vmem>>, vector<16x128xf32>
    %7 = arith.index_cast %4 : i32 to index
    %c0_2 = arith.constant 0 : index
    %8 = vector.load %arg2[%7, %c0_2] : memref<16x128xf32, #tpu.memory_space<vmem>>, vector<16x128xf32>
    %9 = arith.subf %8, %6 : vector<16x128xf32>
    %10 = arith.mulf %9, %9 : vector<16x128xf32>
    %c0_3 = arith.constant 0 : index
    %c0_4 = arith.constant 0 : index
    %c0_5 = arith.constant 0 : index
    %11 = vector.load %arg7[%c0_3, %c0_4, %c0_5] : memref<3x1x128xf32, #tpu.memory_space<vmem>>, vector<1x1x128xf32>
    %12 = vector.shape_cast %11 : vector<1x1x128xf32> to vector<1x128xf32>
    %cst = arith.constant dense<0.000000e+00> : vector<128xf32>
    %13 = vector.multi_reduction <add>, %10, %cst [0] : vector<16x128xf32> to vector<128xf32>
    %14 = vector.shape_cast %13 : vector<128xf32> to vector<1x128xf32>
    %15 = arith.addf %12, %14 : vector<1x128xf32>
    %c0_6 = arith.constant 0 : index
    %c0_7 = arith.constant 0 : index
    %c0_8 = arith.constant 0 : index
    %16 = vector.load %arg7[%c0_6, %c0_7, %c0_8] : memref<3x1x128xf32, #tpu.memory_space<vmem>>, vector<1x1x128xf32>
    %17 = vector.shape_cast %16 : vector<1x1x128xf32> to vector<1x128xf32>
    %18 = vector.shape_cast %15 : vector<1x128xf32> to vector<1x1x128xf32>
    tpu.vector_store %arg7[%c0_6, %c0_7, %c0_8], %18 {strides = array<i32>} : memref<3x1x128xf32, #tpu.memory_space<vmem>>, vector<1x1x128xf32>,
    %19 = arith.index_cast %4 : i32 to index
    %c0_9 = arith.constant 0 : index
    %20 = vector.load %arg3[%19, %c0_9] : memref<16x128xf32, #tpu.memory_space<vmem>>, vector<16x128xf32>
    %21 = arith.subf %20, %6 : vector<16x128xf32>
    %22 = arith.mulf %21, %21 : vector<16x128xf32>
    %c1 = arith.constant 1 : index
    %c0_10 = arith.constant 0 : index
    %c0_11 = arith.constant 0 : index
    %23 = vector.load %arg7[%c1, %c0_10, %c0_11] : memref<3x1x128xf32, #tpu.memory_space<vmem>>, vector<1x1x128xf32>
    %24 = vector.shape_cast %23 : vector<1x1x128xf32> to vector<1x128xf32>
    %cst_12 = arith.constant dense<0.000000e+00> : vector<128xf32>
    %25 = vector.multi_reduction <add>, %22, %cst_12 [0] : vector<16x128xf32> to vector<128xf32>
    %26 = vector.shape_cast %25 : vector<128xf32> to vector<1x128xf32>
    %27 = arith.addf %24, %26 : vector<1x128xf32>
    %c1_13 = arith.constant 1 : index
    %c0_14 = arith.constant 0 : index
    %c0_15 = arith.constant 0 : index
    %28 = vector.load %arg7[%c1_13, %c0_14, %c0_15] : memref<3x1x128xf32, #tpu.memory_space<vmem>>, vector<1x1x128xf32>
    %29 = vector.shape_cast %28 : vector<1x1x128xf32> to vector<1x128xf32>
    %30 = vector.shape_cast %27 : vector<1x128xf32> to vector<1x1x128xf32>
    tpu.vector_store %arg7[%c1_13, %c0_14, %c0_15], %30 {strides = array<i32>} : memref<3x1x128xf32, #tpu.memory_space<vmem>>, vector<1x1x128xf32>,
    %31 = arith.index_cast %4 : i32 to index
    %c0_16 = arith.constant 0 : index
    %32 = vector.load %arg4[%31, %c0_16] : memref<16x128xf32, #tpu.memory_space<vmem>>, vector<16x128xf32>
    %33 = arith.subf %32, %6 : vector<16x128xf32>
    %34 = arith.mulf %33, %33 : vector<16x128xf32>
    %c2 = arith.constant 2 : index
    %c0_17 = arith.constant 0 : index
    %c0_18 = arith.constant 0 : index
    %35 = vector.load %arg7[%c2, %c0_17, %c0_18] : memref<3x1x128xf32, #tpu.memory_space<vmem>>, vector<1x1x128xf32>
    %36 = vector.shape_cast %35 : vector<1x1x128xf32> to vector<1x128xf32>
    %cst_19 = arith.constant dense<0.000000e+00> : vector<128xf32>
    %37 = vector.multi_reduction <add>, %34, %cst_19 [0] : vector<16x128xf32> to vector<128xf32>
    %38 = vector.shape_cast %37 : vector<128xf32> to vector<1x128xf32>
    %39 = arith.addf %36, %38 : vector<1x128xf32>
    %c2_20 = arith.constant 2 : index
    %c0_21 = arith.constant 0 : index
    %c0_22 = arith.constant 0 : index
    %40 = vector.load %arg7[%c2_20, %c0_21, %c0_22] : memref<3x1x128xf32, #tpu.memory_space<vmem>>, vector<1x1x128xf32>
    %41 = vector.shape_cast %40 : vector<1x1x128xf32> to vector<1x128xf32>
    %42 = vector.shape_cast %39 : vector<1x128xf32> to vector<1x1x128xf32>
    tpu.vector_store %arg7[%c2_20, %c0_21, %c0_22], %42 {strides = array<i32>} : memref<3x1x128xf32, #tpu.memory_space<vmem>>, vector<1x1x128xf32>,
    %c1_i32 = arith.constant 1 : i32
    %c0_i32_23 = arith.constant 0 : i32
    %43 = arith.cmpi eq, %arg1, %c0_i32_23 : i32
    %44 = arith.extui %43 : i1 to i32
    %c0_i32_24 = arith.constant 0 : i32
    %45 = arith.cmpi ne, %44, %c0_i32_24 : i32
    scf.if %45 {
      %cst_25 = arith.constant 0.000000e+00 : f32
      %46 = vector.broadcast %cst_25 : f32 to vector<8x128xf32>
      %c0_26 = arith.constant 0 : index
      %c0_27 = arith.constant 0 : index
      %c0_28 = arith.constant 0 : index
      %47 = vector.load %arg7[%c0_26, %c0_27, %c0_28] : memref<3x1x128xf32, #tpu.memory_space<vmem>>, vector<1x1x128xf32>
      %48 = vector.shape_cast %47 : vector<1x1x128xf32> to vector<1x128xf32>
      %49 = vector.shape_cast %48 : vector<1x128xf32> to vector<1x1x128xf32>
      %cst_29 = arith.constant dense<0.000000e+00> : vector<1xf32>
      %50 = vector.multi_reduction <add>, %49, %cst_29 [1, 2] : vector<1x1x128xf32> to vector<1xf32>
      %51 = vector.shape_cast %50 : vector<1xf32> to vector<1x1x1xf32>
      %52 = vector.extract %51[0, 0, 0] : f32 from vector<1x1x1xf32>
      %cst_30 = arith.constant 2.7901787E-4 : f32
      %53 = arith.mulf %52, %cst_30 : f32
      %54 = vector.broadcast %53 : f32 to vector<8x128xf32>
      %c0_31 = arith.constant 0 : index
      %c1_32 = arith.constant 1 : index
      %c0_33 = arith.constant 0 : index
      %c0_34 = arith.constant 0 : index
      %55 = vector.load %arg6[%c0_31, %c1_32, %c0_33, %c0_34] : memref<1x4x8x128xf32, #tpu.memory_space<vmem>>, vector<1x1x8x128xf32>
      %56 = vector.shape_cast %55 : vector<1x1x8x128xf32> to vector<8x128xf32>
      %57 = vector.shape_cast %54 : vector<8x128xf32> to vector<1x1x8x128xf32>
      tpu.vector_store %arg6[%c0_31, %c1_32, %c0_33, %c0_34], %57 {strides = array<i32>} : memref<1x4x8x128xf32, #tpu.memory_space<vmem>>, vector<1x1x8x128xf32>,
      %58 = arith.addf %46, %54 : vector<8x128xf32>
      %c1_35 = arith.constant 1 : index
      %c0_36 = arith.constant 0 : index
      %c0_37 = arith.constant 0 : index
      %59 = vector.load %arg7[%c1_35, %c0_36, %c0_37] : memref<3x1x128xf32, #tpu.memory_space<vmem>>, vector<1x1x128xf32>
      %60 = vector.shape_cast %59 : vector<1x1x128xf32> to vector<1x128xf32>
      %61 = vector.shape_cast %60 : vector<1x128xf32> to vector<1x1x128xf32>
      %cst_38 = arith.constant dense<0.000000e+00> : vector<1xf32>
      %62 = vector.multi_reduction <add>, %61, %cst_38 [1, 2] : vector<1x1x128xf32> to vector<1xf32>
      %63 = vector.shape_cast %62 : vector<1xf32> to vector<1x1x1xf32>
      %64 = vector.extract %63[0, 0, 0] : f32 from vector<1x1x1xf32>
      %cst_39 = arith.constant 1.39508935E-4 : f32
      %65 = arith.mulf %64, %cst_39 : f32
      %66 = vector.broadcast %65 : f32 to vector<8x128xf32>
      %c0_40 = arith.constant 0 : index
      %c2_41 = arith.constant 2 : index
      %c0_42 = arith.constant 0 : index
      %c0_43 = arith.constant 0 : index
      %67 = vector.load %arg6[%c0_40, %c2_41, %c0_42, %c0_43] : memref<1x4x8x128xf32, #tpu.memory_space<vmem>>, vector<1x1x8x128xf32>
      %68 = vector.shape_cast %67 : vector<1x1x8x128xf32> to vector<8x128xf32>
      %69 = vector.shape_cast %66 : vector<8x128xf32> to vector<1x1x8x128xf32>
      tpu.vector_store %arg6[%c0_40, %c2_41, %c0_42, %c0_43], %69 {strides = array<i32>} : memref<1x4x8x128xf32, #tpu.memory_space<vmem>>, vector<1x1x8x128xf32>,
      %70 = arith.addf %58, %66 : vector<8x128xf32>
      %c2_44 = arith.constant 2 : index
      %c0_45 = arith.constant 0 : index
      %c0_46 = arith.constant 0 : index
      %71 = vector.load %arg7[%c2_44, %c0_45, %c0_46] : memref<3x1x128xf32, #tpu.memory_space<vmem>>, vector<1x1x128xf32>
      %72 = vector.shape_cast %71 : vector<1x1x128xf32> to vector<1x128xf32>
      %73 = vector.shape_cast %72 : vector<1x128xf32> to vector<1x1x128xf32>
      %cst_47 = arith.constant dense<0.000000e+00> : vector<1xf32>
      %74 = vector.multi_reduction <add>, %73, %cst_47 [1, 2] : vector<1x1x128xf32> to vector<1xf32>
      %75 = vector.shape_cast %74 : vector<1xf32> to vector<1x1x1xf32>
      %76 = vector.extract %75[0, 0, 0] : f32 from vector<1x1x1xf32>
      %cst_48 = arith.constant 6.97544674E-5 : f32
      %77 = arith.mulf %76, %cst_48 : f32
      %78 = vector.broadcast %77 : f32 to vector<8x128xf32>
      %c0_49 = arith.constant 0 : index
      %c3 = arith.constant 3 : index
      %c0_50 = arith.constant 0 : index
      %c0_51 = arith.constant 0 : index
      %79 = vector.load %arg6[%c0_49, %c3, %c0_50, %c0_51] : memref<1x4x8x128xf32, #tpu.memory_space<vmem>>, vector<1x1x8x128xf32>
      %80 = vector.shape_cast %79 : vector<1x1x8x128xf32> to vector<8x128xf32>
      %81 = vector.shape_cast %78 : vector<8x128xf32> to vector<1x1x8x128xf32>
      tpu.vector_store %arg6[%c0_49, %c3, %c0_50, %c0_51], %81 {strides = array<i32>} : memref<1x4x8x128xf32, #tpu.memory_space<vmem>>, vector<1x1x8x128xf32>,
      %82 = arith.addf %70, %78 : vector<8x128xf32>
      %c0_52 = arith.constant 0 : index
      %c0_53 = arith.constant 0 : index
      %c0_54 = arith.constant 0 : index
      %c0_55 = arith.constant 0 : index
      %83 = vector.load %arg6[%c0_52, %c0_53, %c0_54, %c0_55] : memref<1x4x8x128xf32, #tpu.memory_space<vmem>>, vector<1x1x8x128xf32>
      %84 = vector.shape_cast %83 : vector<1x1x8x128xf32> to vector<8x128xf32>
      %85 = vector.shape_cast %82 : vector<8x128xf32> to vector<1x1x8x128xf32>
      tpu.vector_store %arg6[%c0_52, %c0_53, %c0_54, %c0_55], %85 {strides = array<i32>} : memref<1x4x8x128xf32, #tpu.memory_space<vmem>>, vector<1x1x8x128xf32>,
    } else {
    }
    return
  }
  func.func @transform_0(%arg0: i32, %arg1: i32) -> (i32, i32) {
    %c1_i32 = arith.constant 1 : i32
    %0 = arith.muli %arg0, %c1_i32 : i32
    %1 = arith.addi %0, %arg1 : i32
    %c0_i32 = arith.constant 0 : i32
    %2 = arith.minsi %1, %c0_i32 : i32
    %c0_i32_0 = arith.constant 0 : i32
    %c0_i32_1 = arith.constant 0 : i32
    return %2, %c0_i32_0 : i32, i32
  }
  func.func @transform_1(%arg0: i32, %arg1: i32) -> (i32, i32) {
    %c1_i32 = arith.constant 1 : i32
    %0 = arith.muli %arg0, %c1_i32 : i32
    %1 = arith.addi %0, %arg1 : i32
    %c0_i32 = arith.constant 0 : i32
    %2 = arith.minsi %1, %c0_i32 : i32
    %c0_i32_0 = arith.constant 0 : i32
    %c0_i32_1 = arith.constant 0 : i32
    return %2, %c0_i32_0 : i32, i32
  }
  func.func @transform_2(%arg0: i32, %arg1: i32) -> (i32, i32) {
    %c1_i32 = arith.constant 1 : i32
    %0 = arith.muli %arg0, %c1_i32 : i32
    %1 = arith.addi %0, %arg1 : i32
    %c0_i32 = arith.constant 0 : i32
    %2 = arith.minsi %1, %c0_i32 : i32
    %c0_i32_0 = arith.constant 0 : i32
    %c0_i32_1 = arith.constant 0 : i32
    return %2, %c0_i32_0 : i32, i32
  }
  func.func @transform_3(%arg0: i32, %arg1: i32) -> (i32, i32) {
    %c1_i32 = arith.constant 1 : i32
    %0 = arith.muli %arg0, %c1_i32 : i32
    %1 = arith.addi %0, %arg1 : i32
    %c0_i32 = arith.constant 0 : i32
    %2 = arith.minsi %1, %c0_i32 : i32
    %c0_i32_0 = arith.constant 0 : i32
    %c0_i32_1 = arith.constant 0 : i32
    return %2, %c0_i32_0 : i32, i32
  }
  func.func @transform_4(%arg0: i32, %arg1: i32) -> (i32, i32, i32, i32) {
    %c0_i32 = arith.constant 0 : i32
    %c0_i32_0 = arith.constant 0 : i32
    %c0_i32_1 = arith.constant 0 : i32
    %c0_i32_2 = arith.constant 0 : i32
    return %arg0, %c0_i32, %c0_i32_0, %c0_i32_1 : i32, i32, i32, i32
  }
}

</mosaic_0001>

<llo_original>
// kernel: tpu_custom_call.1
$region0: #{tpu_custom_call.1}
  #allocation0 [shape = 'u32[]', space=smem, size = 0x4, offset = 0x4, fixed_abs, tag = 'smem constant byte address 0x4 - core index']
  #allocation1 [shape = 'u32[144,128]{1,0:T(1,128)}', space=vmem, size = 0x12000, scoped, tag = 'internal scratch']
  #allocation2 [shape = 'f32[3,1,128]{2,1,0:T(1,128)}', space=vmem, size = 0x600, scoped, tag = 'scratch operand']
  %s0 = inlined_call_operand.hbm [shape: f32[16,128], index: 0, kind: input, shape index: {}]
  %s1 = inlined_call_operand.hbm [shape: f32[16,128], index: 1, kind: input, shape index: {}]
  %s2 = inlined_call_operand.hbm [shape: f32[16,128], index: 2, kind: input, shape index: {}]
  %s3 = inlined_call_operand.hbm [shape: f32[16,128], index: 3, kind: input, shape index: {}]
  %s4 = inlined_call_operand.hbm [shape: f32[1,4,8,128], index: 4, kind: output, shape index: {}]
  %s5 = sld [smem:[#allocation0]]
  $region50: #{tpu_custom_call.1} parent=0
    _
  %s7 = ssub.s32 1, %s5
  %s8 = scalar_select 0, %s7, %s5
  $region1: #{tpu_custom_call.1} parent=0
    #allocation3 [shape = 'u8[8192]{0}', space=vmem, size = 0x2000, scoped, tag = 'input window, operand 0, single buffered']
    #allocation4 [shape = 's32[1]{0}', space=sflag, size = 0x4, scoped, tag = 'scoped memory for tpu_custom_call.1']
    #allocation5 [shape = 's32[1]{0}', space=sflag, size = 0x4, scoped, tag = 'scoped memory for tpu_custom_call.1']
    #allocation6 [shape = 'u8[8192]{0}', space=vmem, size = 0x2000, scoped, tag = 'input window, operand 1, single buffered']
    #allocation7 [shape = 's32[1]{0}', space=sflag, size = 0x4, scoped, tag = 'scoped memory for tpu_custom_call.1']
    #allocation8 [shape = 'u8[8192]{0}', space=vmem, size = 0x2000, scoped, tag = 'input window, operand 2, single buffered']
    #allocation9 [shape = 'u8[8192]{0}', space=vmem, size = 0x2000, scoped, tag = 'input window, operand 3, single buffered']
    #allocation10 [shape = 's32[1]{0}', space=sflag, size = 0x4, scoped, tag = 'scoped memory for tpu_custom_call.1']
    #allocation11 [shape = 'u8[16384]{0}', space=vmem, size = 0x4000, scoped, tag = 'output window, operand 0, single buffered']
    %9 = vsyncpa [#allocation4], 0
    %10 = vsyncpa [#allocation7], 0
    %11 = vsyncpa [#allocation10], 0
    %12 = vsyncpa [#allocation5], 0
    // Predicated region
    $region2: #{tpu_custom_call.1} parent=1 // pred_check
      _
    $region3: #{tpu_custom_call.1} parent=1 // pred_check_branch
      %14 = sbr.rel (0) target = $region5
    $region4: #{tpu_custom_call.1} parent=1 // pred_region
      %s15 = sadd.s32 0, 0
      %p16 = scmp.lt.s32.totalorder %s15, 0
      %s17 = scalar_select %p16, %s15, 0
      %s18 = smul.u32 2, %s17
      %s20 = ssub.s32 256, 256
      %21 = vsyncadd [#allocation4], %s20
      %s22 = smul.addr %s18, 128
      %s23 = scalar_lea.hbm %s0, %s22
      %s24 = sshll.u32 [#allocation3], 4
      %s25 = int_to_ptr.vmem [resolvable:$true] %s24
      %30 = dma.hbm_to_vmem [thread:$0]  %s23, 256, %s25, [#allocation4], 128, 128, 8
    $region5: #{tpu_custom_call.1} parent=1 // pred_fallthru
      _
    // Predicated region
    $region6: #{tpu_custom_call.1} parent=1 // pred_check
      _
    $region7: #{tpu_custom_call.1} parent=1 // pred_check_branch
      %32 = sbr.rel (0) target = $region9
    $region8: #{tpu_custom_call.1} parent=1 // pred_region
      %s33 = sadd.s32 0, 0
      %p34 = scmp.lt.s32.totalorder %s33, 0
      %s35 = scalar_select %p34, %s33, 0
      %s36 = smul.u32 2, %s35
      %s38 = ssub.s32 256, 256
      %39 = vsyncadd [#allocation7], %s38
      %s40 = smul.addr %s36, 128
      %s41 = scalar_lea.hbm %s1, %s40
      %s42 = sshll.u32 [#allocation6], 4
      %s43 = int_to_ptr.vmem [resolvable:$true] %s42
      %48 = dma.hbm_to_vmem [thread:$0]  %s41, 256, %s43, [#allocation7], 128, 128, 8
    $region9: #{tpu_custom_call.1} parent=1 // pred_fallthru
      _
    // Predicated region
    $region10: #{tpu_custom_call.1} parent=1 // pred_check
      _
    $region11: #{tpu_custom_call.1} parent=1 // pred_check_branch
      %50 = sbr.rel (0) target = $region13
    $region12: #{tpu_custom_call.1} parent=1 // pred_region
      %s51 = sadd.s32 0, 0
      %p52 = scmp.lt.s32.totalorder %s51, 0
      %s53 = scalar_select %p52, %s51, 0
      %s54 = smul.u32 2, %s53
      %s56 = ssub.s32 256, 256
      %57 = vsyncadd [#allocation7], %s56
      %s58 = smul.addr %s54, 128
      %s59 = scalar_lea.hbm %s2, %s58
      %s60 = sshll.u32 [#allocation8], 4
      %s61 = int_to_ptr.vmem [resolvable:$true] %s60
      %66 = dma.hbm_to_vmem [thread:$0]  %s59, 256, %s61, [#allocation7], 128, 128, 8
    $region13: #{tpu_custom_call.1} parent=1 // pred_fallthru
      _
    // Predicated region
    $region14: #{tpu_custom_call.1} parent=1 // pred_check
      _
    $region15: #{tpu_custom_call.1} parent=1 // pred_check_branch
      %68 = sbr.rel (0) target = $region17
    $region16: #{tpu_custom_call.1} parent=1 // pred_region
      %s69 = sadd.s32 0, 0
      %p70 = scmp.lt.s32.totalorder %s69, 0
      %s71 = scalar_select %p70, %s69, 0
      %s72 = smul.u32 2, %s71
      %s74 = ssub.s32 256, 256
      %75 = vsyncadd [#allocation10], %s74
      %s76 = smul.addr %s72, 128
      %s77 = scalar_lea.hbm %s3, %s76
      %s78 = sshll.u32 [#allocation9], 4
      %s79 = int_to_ptr.vmem [resolvable:$true] %s78
      %84 = dma.hbm_to_vmem [thread:$0]  %s77, 256, %s79, [#allocation10], 128, 128, 8
    $region17: #{tpu_custom_call.1} parent=1 // pred_fallthru
      _
    // Predicated region
    $region18: #{tpu_custom_call.1} parent=1 // pred_check
      _
    $region19: #{tpu_custom_call.1} parent=1 // pred_check_branch
      %86 = sbr.rel (0) target = $region21
    $region20: #{tpu_custom_call.1} parent=1 // pred_region
      %87 = dma.done [#allocation4], 256
    $region21: #{tpu_custom_call.1} parent=1 // pred_fallthru
      _
    // Predicated region
    $region22: #{tpu_custom_call.1} parent=1 // pred_check
      _
    $region23: #{tpu_custom_call.1} parent=1 // pred_check_branch
      %89 = sbr.rel (0) target = $region25
    $region24: #{tpu_custom_call.1} parent=1 // pred_region
      %90 = dma.done [#allocation7], 256
    $region25: #{tpu_custom_call.1} parent=1 // pred_fallthru
      _
    // Predicated region
    $region26: #{tpu_custom_call.1} parent=1 // pred_check
      _
    $region27: #{tpu_custom_call.1} parent=1 // pred_check_branch
      %92 = sbr.rel (0) target = $region29
    $region28: #{tpu_custom_call.1} parent=1 // pred_region
      %93 = dma.done [#allocation7], 256
    $region29: #{tpu_custom_call.1} parent=1 // pred_fallthru
      _
    // Predicated region
    $region30: #{tpu_custom_call.1} parent=1 // pred_check
      _
    $region31: #{tpu_custom_call.1} parent=1 // pred_check_branch
      %95 = sbr.rel (0) target = $region33
    $region32: #{tpu_custom_call.1} parent=1 // pred_region
      %96 = dma.done [#allocation10], 256
    $region33: #{tpu_custom_call.1} parent=1 // pred_fallthru
      _
    %s97 = sadd.s32 0, 0
    %p98 = scmp.lt.s32.totalorder %s97, 0
    %s99 = scalar_select %p98, %s97, 0
    %s100 = smul.u32 2, %s99
    %s101 = sadd.s32 0, 0
    %p102 = scmp.lt.s32.totalorder %s101, 0
    %s103 = scalar_select %p102, %s101, 0
    %s104 = smul.u32 2, %s103
    %s105 = sadd.s32 0, 0
    %p106 = scmp.lt.s32.totalorder %s105, 0
    %s107 = scalar_select %p106, %s105, 0
    %s108 = smul.u32 2, %s107
    %s109 = sadd.s32 0, 0
    %p110 = scmp.lt.s32.totalorder %s109, 0
    %s111 = scalar_select %p110, %s109, 0
    %s112 = smul.u32 2, %s111
    %p113 = scmp.eq.s32.totalorder 0, 0
    // Predicated region
    $region34: #{tpu_custom_call.1} parent=1 // pred_check
      %p114 = pneg %p113
    $region35: #{tpu_custom_call.1} parent=1 // pred_check_branch
      %116 = sbr.rel (%p114) target = $region37
    $region36: #{tpu_custom_call.1} parent=1 // pred_region
      %117 = vst [vmem:[#allocation2] sm:$0x1] 0.0
      %118 = vst [vmem:[#allocation2 + $0x1] sm:$0x1] 0.0
      %119 = vst [vmem:[#allocation2 + $0x2] sm:$0x1] 0.0
    $region37: #{tpu_custom_call.1} parent=1 // pred_fallthru
      _
    %v120 = vld [vmem:[#allocation9] sm:$0xff]
    %v121 = vld [vmem:[#allocation9 + $0x8] sm:$0xff]
    %v122 = vld [vmem:[#allocation3] sm:$0xff]
    %v123 = vld [vmem:[#allocation3 + $0x8] sm:$0xff]
    %v124 = vsub.f32 %v122, %v120
    %v125 = vsub.f32 %v123, %v121
    %v126 = vmul.f32 %v124, %v124
    %v127 = vmul.f32 %v125, %v125
    %v128 = vld [vmem:[#allocation2] sm:$0x1]
    %v129 = vadd.f32 %v126, %v127
    %v130 = vrot.slane %v129, 4
    %v131 = vadd.f32 %v129, %v130
    %v132 = vrot.slane %v131, 2
    %v133 = vadd.f32 %v131, %v132
    %v134 = vrot.slane %v133, 1
    %v135 = vadd.f32 %v133, %v134
    %v136 = vadd.f32 %v128, %v135
    %137 = vst [vmem:[#allocation2] sm:$0x1] %v136
    %v138 = vld [vmem:[#allocation6] sm:$0xff]
    %v139 = vld [vmem:[#allocation6 + $0x8] sm:$0xff]
    %v140 = vsub.f32 %v138, %v120
    %v141 = vsub.f32 %v139, %v121
    %v142 = vmul.f32 %v140, %v140
    %v143 = vmul.f32 %v141, %v141
    %s144 = scalar_lea.vmem [#allocation2], 1
    %v145 = vld [vmem:[%s144] sm:$0x1]
    %v146 = vadd.f32 %v142, %v143
    %v147 = vrot.slane %v146, 4
    %v148 = vadd.f32 %v146, %v147
    %v149 = vrot.slane %v148, 2
    %v150 = vadd.f32 %v148, %v149
    %v151 = vrot.slane %v150, 1
    %v152 = vadd.f32 %v150, %v151
    %v153 = vadd.f32 %v145, %v152
    %154 = vst [vmem:[%s144] sm:$0x1] %v153
    %v155 = vld [vmem:[#allocation8] sm:$0xff]
    %v156 = vld [vmem:[#allocation8 + $0x8] sm:$0xff]
    %v157 = vsub.f32 %v155, %v120
    %v158 = vsub.f32 %v156, %v121
    %v159 = vmul.f32 %v157, %v157
    %v160 = vmul.f32 %v158, %v158
    %s161 = scalar_lea.vmem [#allocation2], 2
    %v162 = vld [vmem:[%s161] sm:$0x1]
    %v163 = vadd.f32 %v159, %v160
    %v164 = vrot.slane %v163, 4
    %v165 = vadd.f32 %v163, %v164
    %v166 = vrot.slane %v165, 2
    %v167 = vadd.f32 %v165, %v166
    %v168 = vrot.slane %v167, 1
    %v169 = vadd.f32 %v167, %v168
    %v170 = vadd.f32 %v162, %v169
    %171 = vst [vmem:[%s161] sm:$0x1] %v170
    // Predicated region
    $region38: #{tpu_custom_call.1} parent=1 // pred_check
      %p172 = pneg %p113
    $region39: #{tpu_custom_call.1} parent=1 // pred_check_branch
      %174 = sbr.rel (%p172) target = $region41
    $region40: #{tpu_custom_call.1} parent=1 // pred_region
      %v175 = vld [vmem:[#allocation2] sm:$0x1]
      %vm176 = vcmask 1040384
      %v177 = vsel %vm176, %v175, 0.0
      %178 = vadd.xlane.f32.xlu0 %v177
      %v179 = vpop.xlane.xlu0 %178
      %v180 = vrot.slane %v179, 4
      %v181 = vadd.f32 %v179, %v180
      %v182 = vrot.slane %v181, 2
      %v183 = vadd.f32 %v181, %v182
      %v184 = vrot.slane %v183, 1
      %v185 = vadd.f32 %v183, %v184
      %s186 = vtos %v185
      %s187 = smul.f32 %s186, 0.00027901787
      %v188 = vstv %s187
      %s189 = scalar_lea.vmem [#allocation11], 8
      %190 = vst [vmem:[%s189] sm:$0xff] %v188
      %v191 = vadd.f32 %v188, 0.0
      %v192 = vld [vmem:[%s144] sm:$0x1]
      %v193 = vsel %vm176, %v192, 0.0
      %194 = vadd.xlane.f32.xlu0 %v193
      %v195 = vpop.xlane.xlu0 %194
      %v196 = vrot.slane %v195, 4
      %v197 = vadd.f32 %v195, %v196
      %v198 = vrot.slane %v197, 2
      %v199 = vadd.f32 %v197, %v198
      %v200 = vrot.slane %v199, 1
      %v201 = vadd.f32 %v199, %v200
      %s202 = vtos %v201
      %s203 = smul.f32 %s202, 0.00013950893
      %v204 = vstv %s203
      %s205 = scalar_lea.vmem [#allocation11], 16
      %206 = vst [vmem:[%s205] sm:$0xff] %v204
      %v207 = vadd.f32 %v191, %v204
      %v208 = vld [vmem:[%s161] sm:$0x1]
      %v209 = vsel %vm176, %v208, 0.0
      %210 = vadd.xlane.f32.xlu0 %v209
      %v211 = vpop.xlane.xlu0 %210
      %v212 = vrot.slane %v211, 4
      %v213 = vadd.f32 %v211, %v212
      %v214 = vrot.slane %v213, 2
      %v215 = vadd.f32 %v213, %v214
      %v216 = vrot.slane %v215, 1
      %v217 = vadd.f32 %v215, %v216
      %s218 = vtos %v217
      %s219 = smul.f32 %s218, 6.975447e-05
      %v220 = vstv %s219
      %s221 = scalar_lea.vmem [#allocation11], 24
      %222 = vst [vmem:[%s221] sm:$0xff] %v220
      %v223 = vadd.f32 %v207, %v220
      %224 = vst [vmem:[#allocation11] sm:$0xff] %v223
    $region41: #{tpu_custom_call.1} parent=1 // pred_fallthru
      _
    // Predicated region
    $region42: #{tpu_custom_call.1} parent=1 // pred_check
      _
    $region43: #{tpu_custom_call.1} parent=1 // pred_check_branch
      %226 = sbr.rel (0) target = $region45
    $region44: #{tpu_custom_call.1} parent=1 // pred_region
      %s228 = ssub.s32 512, 512
      %229 = vsyncadd [#allocation5], %s228
      %s230 = sshll.u32 [#allocation11], 4
      %s231 = int_to_ptr.vmem [resolvable:$true] %s230
      %236 = dma.vmem_to_hbm [thread:$0]  %s231, 512, %s4, [#allocation5], 128, 128, 8
    $region45: #{tpu_custom_call.1} parent=1 // pred_fallthru
      _
    // Predicated region
    $region46: #{tpu_custom_call.1} parent=1 // pred_check
      _
    $region47: #{tpu_custom_call.1} parent=1 // pred_check_branch
      %238 = sbr.rel (0) target = $region49
    $region48: #{tpu_custom_call.1} parent=1 // pred_region
      %239 = dma.done [#allocation5], 512
    $region49: #{tpu_custom_call.1} parent=1 // pred_fallthru
      _
    %240 = vsyncpa [#allocation4], 1
    %241 = vsyncpa [#allocation7], 1
    %242 = vsyncpa [#allocation10], 1
    %243 = vsyncpa [#allocation5], 1

</llo_original>
